<compile_context>
chip_gen: v7x
topology: tpu7x:2x2x1
jax: 0.10.0
libtpu: 0.0.40
codegen_flags: <defaults>
</compile_context>

<pallas_src>
import functools

import jax
import jax.numpy as jnp
from jax.experimental import pallas as pl
from jax.experimental.pallas import tpu as pltpu

EPS = 1e-5  # PyTorch nn.LayerNorm default


def _round_up(x, m):
    return ((x + m - 1) // m) * m


def _min_sublane(dtype):
    # Minimal second-to-last tile dim per dtype: f32 -> 8, bf16 -> 16, 8-bit -> 32.
    return {4: 8, 2: 16, 1: 32}.get(jnp.dtype(dtype).itemsize, 8)


def _choose_tm(rows, block_rows, min_sub):
    """Row tile: multiple of min_sub, large (amortize ~0.35us/step), minimal padding waste."""
    block_rows = max(min_sub, (block_rows // min_sub) * min_sub)
    if rows <= block_rows:
        return _round_up(rows, min_sub)          # single row tile, <= min_sub-1 pad rows
    lo = max(min_sub, (block_rows // 2 // min_sub) * min_sub)
    best_t, best_key = block_rows, None
    t = block_rows
    while t >= lo:
        waste = _round_up(rows, t) - rows
        key = (waste, -t)                        # least padding, then largest tile
        if best_key is None or key < best_key:
            best_key, best_t = key, t
        t -= min_sub
    return best_t


def prenorm_kernel(x_ref, w_ref, b_ref, o_ref, normed_ref, *, inv_d):
    # x_ref:      (TM, Din)  row tile (feature axis zero-padded to 128-multiple)
    # w_ref:      (Din, TN)  column slab of the affine-folded Linear weight
    # b_ref:      (1, TN)    column slab of the affine-folded Linear bias (f32)
    # o_ref:      (TM, TN)
    # normed_ref: (TM, Din)  VMEM scratch holding LayerNorm(x) in the matmul dtype

    # LayerNorm once per row tile (first column step only); one-pass f32 stats.
    @pl.when(pl.program_id(1) == 0)
    def _():
        x = x_ref[...].astype(jnp.float32)
        s1 = jnp.sum(x, axis=-1, keepdims=True)
        s2 = jnp.sum(x * x, axis=-1, keepdims=True)
        mean = s1 * inv_d
        var = jnp.maximum(s2 * inv_d - mean * mean, 0.0)
        # Padded feature lanes are zero -> stats exact; the nonzero garbage
        # they leave in `normed` multiplies zero-padded weight rows below.
        normed_ref[...] = ((x - mean) * jax.lax.rsqrt(var + EPS)).astype(normed_ref.dtype)

    # fn(x): Linear with affine-folded parameters (MXU, f32 accumulate).
    y = jnp.dot(normed_ref[...], w_ref[...], preferred_element_type=jnp.float32)
    o_ref[...] = (y + b_ref[...].astype(jnp.float32)).astype(o_ref.dtype)


def prenorm(x, gamma, beta, w, b, *, block_rows=512, block_cols=512,
            matmul_dtype=jnp.bfloat16, vmem_limit_bytes=None):
    """Returns fn(LayerNorm(x)) with fn = Linear(D, D).  x: (B, N, D)."""
    B, N, D = x.shape
    rows = B * N
    out_dtype = x.dtype
    x_bytes = jnp.dtype(x.dtype).itemsize
    w_bytes = jnp.dtype(matmul_dtype).itemsize
    o_bytes = jnp.dtype(out_dtype).itemsize

    # Fold the LayerNorm affine into the Linear:
    #   (normed*gamma + beta) @ w + b == normed @ (gamma[:,None]*w) + (beta@w + b)
    w32 = w.astype(jnp.float32)
    w_f = (gamma.astype(jnp.float32)[:, None] * w32).astype(matmul_dtype)
    b_f = beta.astype(jnp.float32) @ w32 + b.astype(jnp.float32)

    # VMEM budget: physical capacity minus headroom (never the full 64 MiB on
    # v7x), capped at 112 MiB so v5e/v6e can use big tiles above the scoped
    # default while leaving room for compiler-internal scratch.
    if vmem_limit_bytes is None:
        try:
            cap = pltpu.get_tpu_info().vmem_capacity_bytes
        except Exception:  # pragma: no cover - conservative fallback
            cap = 128 * 1024 * 1024
        vmem_limit_bytes = max(32 * 1024 * 1024,
                               min(cap - 12 * 1024 * 1024, 112 * 1024 * 1024))
    vmem_limit_bytes = int(vmem_limit_bytes)

    d_in = _round_up(D, 128)                      # lane-dense feature/reduction axis
    min_sub = max(_min_sublane(x.dtype), _min_sublane(matmul_dtype))
    tm = _choose_tm(rows, block_rows, min_sub)

    def vmem_use(tm_, tn_):
        return (2 * tm_ * d_in * x_bytes          # x tile (double-buffered)
                + 2 * d_in * tn_ * w_bytes        # weight slab
                + 2 * tn_ * 4                     # bias slab (f32)
                + 2 * tm_ * tn_ * o_bytes         # output tile
                + tm_ * d_in * w_bytes)           # normed scratch (matmul dtype)

    # Prefer keeping the whole weight resident (constant block index -> DMA'd
    # from HBM exactly once).  Otherwise tile output columns; LN is still
    # computed once per row tile via the scratch, only the weight re-streams.
    if vmem_use(tm, d_in) <= vmem_limit_bytes:
        tn = d_in
    else:
        tn = min(_round_up(block_cols, 128), d_in)
        while tn > 128 and vmem_use(tm, tn) > vmem_limit_bytes:
            tn = max(128, (tn // 2 // 128) * 128)
        while tm > min_sub and vmem_use(tm, tn) > vmem_limit_bytes:
            tm = max(min_sub, ((tm // 2) // min_sub) * min_sub)
    d_out = d_in if tn == d_in else _round_up(D, tn)   # no d_pad%tn cliff
    rows_pad = _round_up(rows, tm)

    # Only pad / slice when actually needed (each is a full HBM pass).
    x2 = x.reshape(rows, D)
    if rows_pad != rows or d_in != D:
        x2 = jnp.pad(x2, ((0, rows_pad - rows), (0, d_in - D)))
    w2 = w_f if (d_in == D and d_out == D) else jnp.pad(
        w_f, ((0, d_in - D), (0, d_out - D)))
    b2 = b_f.reshape(1, D)
    if d_out != D:
        b2 = jnp.pad(b2, ((0, 0), (0, d_out - D)))

    grid_i = rows_pad // tm
    grid_j = d_out // tn
    weight_passes = 1 if grid_j == 1 else grid_i
    cost = pl.CostEstimate(
        flops=2 * rows * D * D,
        transcendentals=rows,                      # one rsqrt per row
        bytes_accessed=int(rows_pad * d_in * x_bytes
                           + rows_pad * d_out * o_bytes
                           + weight_passes * d_in * d_out * w_bytes
                           + d_out * 4),
    )

    kernel = functools.partial(prenorm_kernel, inv_d=1.0 / D)
    out = pl.pallas_call(
        kernel,
        out_shape=jax.ShapeDtypeStruct((rows_pad, d_out), out_dtype),
        grid_spec=pltpu.PrefetchScalarGridSpec(
            num_scalar_prefetch=0,
            grid=(grid_i, grid_j),
            in_specs=[
                pl.BlockSpec((tm, d_in), lambda i, j: (i, 0)),   # x row tile
                pl.BlockSpec((d_in, tn), lambda i, j: (0, j)),   # weight slab
                pl.BlockSpec((1, tn), lambda i, j: (0, j)),      # bias slab
            ],
            out_specs=pl.BlockSpec((tm, tn), lambda i, j: (i, j)),
            scratch_shapes=[pltpu.VMEM((tm, d_in), jnp.dtype(matmul_dtype))],
        ),
        compiler_params=pltpu.CompilerParams(
            dimension_semantics=("parallel", "arbitrary"),
            vmem_limit_bytes=vmem_limit_bytes,
        ),
        cost_estimate=cost,
    )(x2, w2, b2)

    if rows_pad != rows or d_out != D:
        out = out[:rows, :D]
    return out.reshape(B, N, D)


def prenorm_ref(x, gamma, beta, w, b):
    """Pure-JAX reference (mirrors nn.LayerNorm + Linear)."""
    mean = jnp.mean(x, axis=-1, keepdims=True)
    var = jnp.mean((x - mean) ** 2, axis=-1, keepdims=True)
    normed = (x - mean) * jax.lax.rsqrt(var + EPS) * gamma + beta
    return normed @ w + b


if __name__ == "__main__":
    B, N, D = 2, 8, 32  # batch, seq, hidden (dim)
    key = jax.random.PRNGKey(0)
    kx, kw, kg, kbt, kb = jax.random.split(key, 5)

    x = jax.random.normal(kx, (B, N, D), dtype=jnp.float32)

    # Nontrivial affine parameters to exercise the gamma/beta folding.
    gamma = 1.0 + 0.1 * jax.random.normal(kg, (D,), dtype=jnp.float32)
    beta = 0.1 * jax.random.normal(kbt, (D,), dtype=jnp.float32)
    w = jax.random.normal(kw, (D, D), dtype=jnp.float32) * 0.02  # fn = Linear(D, D)
    b = 0.01 * jax.random.normal(kb, (D,), dtype=jnp.float32)

    ref = prenorm_ref(x, gamma, beta, w, b)

    # Exact-precision path (f32 MXU feed): tight check against the reference.
    out_f32 = jax.block_until_ready(
        prenorm(x, gamma, beta, w, b, matmul_dtype=jnp.float32))
    assert out_f32.shape == (B, N, D)
    assert jnp.allclose(out_f32, ref, atol=1e-4, rtol=1e-4), "f32 path mismatch"

    # Default fast path (bf16 MXU feed, native on v5e/v6e/v7x): looser tolerance.
    out_bf16 = jax.block_until_ready(prenorm(x, gamma, beta, w, b))
    assert out_bf16.shape == (B, N, D)
    assert jnp.allclose(out_bf16, ref, atol=2e-2, rtol=2e-2), "bf16 path mismatch"

    print("KERNEL_OK")
</pallas_src>

<mosaic_0001>
module attributes {stable_mosaic.version = 11 : i64} {
  func.func @prenorm_kernel(%arg0: i32, %arg1: i32, %arg2: memref<16x128xf32, #tpu.memory_space<vmem>>, %arg3: memref<128x128xf32, #tpu.memory_space<vmem>>, %arg4: memref<1x128xf32, #tpu.memory_space<vmem>>, %arg5: memref<16x128xf32, #tpu.memory_space<vmem>>, %arg6: memref<16x128xf32, #tpu.memory_space<vmem>>) attributes {dimension_semantics = [#tpu.dimension_semantics<parallel>, #tpu.dimension_semantics<arbitrary>], iteration_bounds = array<i64: 1, 1>, scalar_prefetch = 0 : i64, scratch_operands = 1 : i64, tpu.core_type = #tpu.core_type<tc>, window_params = [{transform_indices = @transform_0, window_bounds = array<i64: 16, 128>}, {transform_indices = @transform_1, window_bounds = array<i64: 128, 128>}, {transform_indices = @transform_2, window_bounds = array<i64: 1, 128>}, {transform_indices = @transform_3, window_bounds = array<i64: 16, 128>}]} {
    %c0_i32 = arith.constant 0 : i32
    %0 = arith.cmpi eq, %arg1, %c0_i32 : i32
    %1 = arith.extui %0 : i1 to i32
    %c0_i32_0 = arith.constant 0 : i32
    %2 = arith.cmpi ne, %1, %c0_i32_0 : i32
    scf.if %2 {
      %c0_8 = arith.constant 0 : index
      %c0_9 = arith.constant 0 : index
      %10 = vector.load %arg2[%c0_8, %c0_9] : memref<16x128xf32, #tpu.memory_space<vmem>>, vector<16x128xf32>
      %cst_10 = arith.constant dense<0.000000e+00> : vector<16xf32>
      %11 = vector.multi_reduction <add>, %10, %cst_10 [1] : vector<16x128xf32> to vector<16xf32>
      %12 = vector.shape_cast %11 : vector<16xf32> to vector<16x1xf32>
      %13 = arith.mulf %10, %10 : vector<16x128xf32>
      %cst_11 = arith.constant dense<0.000000e+00> : vector<16xf32>
      %14 = vector.multi_reduction <add>, %13, %cst_11 [1] : vector<16x128xf32> to vector<16xf32>
      %15 = vector.shape_cast %14 : vector<16xf32> to vector<16x1xf32>
      %cst_12 = arith.constant 3.125000e-02 : f32
      %16 = vector.broadcast %cst_12 : f32 to vector<16x1xf32>
      %17 = arith.mulf %12, %16 : vector<16x1xf32>
      %cst_13 = arith.constant 3.125000e-02 : f32
      %18 = vector.broadcast %cst_13 : f32 to vector<16x1xf32>
      %19 = arith.mulf %15, %18 : vector<16x1xf32>
      %20 = arith.mulf %17, %17 : vector<16x1xf32>
      %21 = arith.subf %19, %20 : vector<16x1xf32>
      %cst_14 = arith.constant 0.000000e+00 : f32
      %22 = vector.broadcast %cst_14 : f32 to vector<16x1xf32>
      %23 = arith.maximumf %21, %22 : vector<16x1xf32>
      %24 = vector.broadcast %17 : vector<16x1xf32> to vector<16x128xf32>
      %25 = arith.subf %10, %24 : vector<16x128xf32>
      %cst_15 = arith.constant 9.99999974E-6 : f32
      %26 = vector.broadcast %cst_15 : f32 to vector<16x1xf32>
      %27 = arith.addf %23, %26 : vector<16x1xf32>
      %28 = math.rsqrt %27 : vector<16x1xf32>
      %29 = vector.broadcast %28 : vector<16x1xf32> to vector<16x128xf32>
      %30 = arith.mulf %25, %29 : vector<16x128xf32>
      %c0_16 = arith.constant 0 : index
      %c0_17 = arith.constant 0 : index
      %31 = vector.load %arg6[%c0_16, %c0_17] : memref<16x128xf32, #tpu.memory_space<vmem>>, vector<16x128xf32>
      tpu.vector_store %arg6[%c0_16, %c0_17], %30 {strides = array<i32>} : memref<16x128xf32, #tpu.memory_space<vmem>>, vector<16x128xf32>,
    } else {
    }
    %c0 = arith.constant 0 : index
    %c0_1 = arith.constant 0 : index
    %3 = vector.load %arg6[%c0, %c0_1] : memref<16x128xf32, #tpu.memory_space<vmem>>, vector<16x128xf32>
    %c0_2 = arith.constant 0 : index
    %c0_3 = arith.constant 0 : index
    %4 = vector.load %arg3[%c0_2, %c0_3] : memref<128x128xf32, #tpu.memory_space<vmem>>, vector<128x128xf32>
    %cst = arith.constant dense<0.000000e+00> : vector<16x128xf32>
    %5 = tpu.matmul %3, %4, %cst {dimension_numbers = #tpu.dot_dimension_numbers<[1], [0], [0], [1], [0, 0, 1, 1], [], []>} : vector<16x128xf32>, vector<128x128xf32>, vector<16x128xf32> -> vector<16x128xf32>
    %c0_4 = arith.constant 0 : index
    %c0_5 = arith.constant 0 : index
    %6 = vector.load %arg4[%c0_4, %c0_5] : memref<1x128xf32, #tpu.memory_space<vmem>>, vector<1x128xf32>
    %7 = vector.broadcast %6 : vector<1x128xf32> to vector<16x128xf32>
    %8 = arith.addf %5, %7 : vector<16x128xf32>
    %c0_6 = arith.constant 0 : index
    %c0_7 = arith.constant 0 : index
    %9 = vector.load %arg5[%c0_6, %c0_7] : memref<16x128xf32, #tpu.memory_space<vmem>>, vector<16x128xf32>
    tpu.vector_store %arg5[%c0_6, %c0_7], %8 {strides = array<i32>} : memref<16x128xf32, #tpu.memory_space<vmem>>, vector<16x128xf32>,
    return
  }
  func.func @transform_0(%arg0: i32, %arg1: i32) -> (i32, i32) {
    %c0_i32 = arith.constant 0 : i32
    %c0_i32_0 = arith.constant 0 : i32
    return %arg0, %c0_i32 : i32, i32
  }
  func.func @transform_1(%arg0: i32, %arg1: i32) -> (i32, i32) {
    %c0_i32 = arith.constant 0 : i32
    %c0_i32_0 = arith.constant 0 : i32
    return %c0_i32, %arg1 : i32, i32
  }
  func.func @transform_2(%arg0: i32, %arg1: i32) -> (i32, i32) {
    %c0_i32 = arith.constant 0 : i32
    %c0_i32_0 = arith.constant 0 : i32
    return %c0_i32, %arg1 : i32, i32
  }
  func.func @transform_3(%arg0: i32, %arg1: i32) -> (i32, i32) {
    %c0_i32 = arith.constant 0 : i32
    return %arg0, %arg1 : i32, i32
  }
}

</mosaic_0001>

<llo_original>
// kernel: tpu_custom_call.1
$region0: #{tpu_custom_call.1}
  #allocation0 [shape = 'u32[]', space=smem, size = 0x4, offset = 0x4, fixed_abs, tag = 'smem constant byte address 0x4 - core index']
  #allocation1 [shape = 'u32[144,128]{1,0:T(1,128)}', space=vmem, size = 0x12000, scoped, tag = 'internal scratch']
  #allocation2 [shape = 'f32[16,128]{1,0:T(8,128)}', space=vmem, size = 0x2000, scoped, tag = 'scratch operand']
  %s0 = inlined_call_operand.hbm [shape: f32[16,128], index: 0, kind: input, shape index: {}]
  %s1 = inlined_call_operand.hbm [shape: f32[128,128], index: 1, kind: input, shape index: {}]
  %s2 = inlined_call_operand.hbm [shape: f32[1,128], index: 2, kind: input, shape index: {}]
  %s3 = inlined_call_operand.hbm [shape: f32[16,128], index: 3, kind: output, shape index: {}]
  %s4 = sld [smem:[#allocation0]]
  $region38: #{tpu_custom_call.1} parent=0
    _
  %s6 = ssub.s32 1, %s4
  %s7 = scalar_select 0, %s6, %s4
  $region1: #{tpu_custom_call.1} parent=0
    #allocation3 [shape = 'u8[8192]{0}', space=vmem, size = 0x2000, scoped, tag = 'input window, operand 0, single buffered']
    #allocation4 [shape = 's32[1]{0}', space=sflag, size = 0x4, scoped, tag = 'scoped memory for tpu_custom_call.1']
    #allocation5 [shape = 's32[1]{0}', space=sflag, size = 0x4, scoped, tag = 'scoped memory for tpu_custom_call.1']
    #allocation6 [shape = 'u8[65536]{0}', space=vmem, size = 0x10000, scoped, tag = 'input window, operand 1, single buffered']
    #allocation7 [shape = 's32[1]{0}', space=sflag, size = 0x4, scoped, tag = 'scoped memory for tpu_custom_call.1']
    #allocation8 [shape = 'u8[512]{0}', space=vmem, size = 0x400, scoped, tag = 'input window, operand 2, single buffered']
    #allocation9 [shape = 'u8[8192]{0}', space=vmem, size = 0x2000, scoped, tag = 'output window, operand 0, single buffered']
    %8 = vsyncpa [#allocation4], 0
    %9 = vsyncpa [#allocation7], 0
    %10 = vsyncpa [#allocation5], 0
    // Predicated region
    $region2: #{tpu_custom_call.1} parent=1 // pred_check
      _
    $region3: #{tpu_custom_call.1} parent=1 // pred_check_branch
      %12 = sbr.rel (0) target = $region5
    $region4: #{tpu_custom_call.1} parent=1 // pred_region
      %s14 = ssub.s32 256, 256
      %15 = vsyncadd [#allocation4], %s14
      %s16 = sshll.u32 [#allocation3], 4
      %s17 = int_to_ptr.vmem [resolvable:$true] %s16
      %22 = dma.hbm_to_vmem [thread:$0]  %s0, 256, %s17, [#allocation4], 128, 128, 8
    $region5: #{tpu_custom_call.1} parent=1 // pred_fallthru
      _
    // Predicated region
    $region6: #{tpu_custom_call.1} parent=1 // pred_check
      _
    $region7: #{tpu_custom_call.1} parent=1 // pred_check_branch
      %24 = sbr.rel (0) target = $region9
    $region8: #{tpu_custom_call.1} parent=1 // pred_region
      %s26 = ssub.s32 2048, 2048
      %27 = vsyncadd [#allocation7], %s26
      %s28 = sshll.u32 [#allocation6], 4
      %s29 = int_to_ptr.vmem [resolvable:$true] %s28
      %34 = dma.hbm_to_vmem [thread:$0]  %s1, 2048, %s29, [#allocation7], 128, 128, 8
    $region9: #{tpu_custom_call.1} parent=1 // pred_fallthru
      _
    // Predicated region
    $region10: #{tpu_custom_call.1} parent=1 // pred_check
      _
    $region11: #{tpu_custom_call.1} parent=1 // pred_check_branch
      %36 = sbr.rel (0) target = $region13
    $region12: #{tpu_custom_call.1} parent=1 // pred_region
      %s38 = ssub.s32 16, 16
      %39 = vsyncadd [#allocation7], %s38
      %s41 = sshll.u32 [#allocation8], 4
      %s42 = int_to_ptr.vmem [resolvable:$true] %s41
      %44 = dma.hbm_to_vmem [thread:$0]  %s2, 16, %s42, [#allocation7]
    $region13: #{tpu_custom_call.1} parent=1 // pred_fallthru
      _
    // Predicated region
    $region14: #{tpu_custom_call.1} parent=1 // pred_check
      _
    $region15: #{tpu_custom_call.1} parent=1 // pred_check_branch
      %46 = sbr.rel (0) target = $region17
    $region16: #{tpu_custom_call.1} parent=1 // pred_region
      %47 = dma.done [#allocation4], 256
    $region17: #{tpu_custom_call.1} parent=1 // pred_fallthru
      _
    // Predicated region
    $region18: #{tpu_custom_call.1} parent=1 // pred_check
      _
    $region19: #{tpu_custom_call.1} parent=1 // pred_check_branch
      %49 = sbr.rel (0) target = $region21
    $region20: #{tpu_custom_call.1} parent=1 // pred_region
      %50 = dma.done [#allocation7], 2048
    $region21: #{tpu_custom_call.1} parent=1 // pred_fallthru
      _
    // Predicated region
    $region22: #{tpu_custom_call.1} parent=1 // pred_check
      _
    $region23: #{tpu_custom_call.1} parent=1 // pred_check_branch
      %52 = sbr.rel (0) target = $region25
    $region24: #{tpu_custom_call.1} parent=1 // pred_region
      %53 = dma.done [#allocation7], 16
    $region25: #{tpu_custom_call.1} parent=1 // pred_fallthru
      _
    %p54 = scmp.eq.s32.totalorder 0, 0
    // Predicated region
    $region26: #{tpu_custom_call.1} parent=1 // pred_check
      %p55 = pneg %p54
    $region27: #{tpu_custom_call.1} parent=1 // pred_check_branch
      %57 = sbr.rel (%p55) target = $region29
    $region28: #{tpu_custom_call.1} parent=1 // pred_region
      %v58 = vld [vmem:[#allocation3] sm:$0xff]
      %v59 = vld [vmem:[#allocation3 + $0x8] sm:$0xff]
      %60 = vadd.xlane.f32.xlu0 %v58
      %v61 = vpop.xlane.xlu0 %60
      %62 = vadd.xlane.f32.xlu0 %v59
      %v63 = vpop.xlane.xlu0 %62
      %v64 = vmul.f32 %v58, %v58
      %v65 = vmul.f32 %v59, %v59
      %66 = vadd.xlane.f32.xlu0 %v64
      %v67 = vpop.xlane.xlu0 %66
      %68 = vadd.xlane.f32.xlu0 %v65
      %v69 = vpop.xlane.xlu0 %68
      %v70 = vmul.f32 %v61, 0.03125
      %v71 = vmul.f32 %v63, 0.03125
      %v72 = vmul.f32 %v67, 0.03125
      %v73 = vmul.f32 %v69, 0.03125
      %v74 = vmul.f32 %v70, %v70
      %v75 = vmul.f32 %v71, %v71
      %v76 = vsub.f32 %v72, %v74
      %v77 = vsub.f32 %v73, %v75
      %v78 = vmax.f32 %v76, 0.0
      %v79 = vmax.f32 %v77, 0.0
      %v80 = vsub.f32 %v58, %v70
      %v81 = vsub.f32 %v59, %v71
      %v82 = vadd.f32 %v78, 1e-05
      %v83 = vadd.f32 %v79, 1e-05
      %v84 = vrsqrt.pop %v82
      %v85 = vrsqrt.pop %v83
      %v86 = vmul.f32 %v80, %v84
      %v87 = vmul.f32 %v81, %v85
      %88 = vst [vmem:[#allocation2] sm:$0xff] %v86
      %89 = vst [vmem:[#allocation2 + $0x8] sm:$0xff] %v87
    $region29: #{tpu_custom_call.1} parent=1 // pred_fallthru
      _
    %v90 = vld [vmem:[#allocation2] sm:$0xff]
    %v91 = vld [vmem:[#allocation2 + $0x8] sm:$0xff]
    %v92 = vld [vmem:[#allocation6] sm:$0xff]
    %v93 = vld [vmem:[#allocation6 + $0x8] sm:$0xff]
    %v94 = vld [vmem:[#allocation6 + $0x10] sm:$0xff]
    %v95 = vld [vmem:[#allocation6 + $0x18] sm:$0xff]
    %v96 = vld [vmem:[#allocation6 + $0x20] sm:$0xff]
    %v97 = vld [vmem:[#allocation6 + $0x28] sm:$0xff]
    %v98 = vld [vmem:[#allocation6 + $0x30] sm:$0xff]
    %v99 = vld [vmem:[#allocation6 + $0x38] sm:$0xff]
    %v100 = vld [vmem:[#allocation6 + $0x40] sm:$0xff]
    %v101 = vld [vmem:[#allocation6 + $0x48] sm:$0xff]
    %v102 = vld [vmem:[#allocation6 + $0x50] sm:$0xff]
    %v103 = vld [vmem:[#allocation6 + $0x58] sm:$0xff]
    %v104 = vld [vmem:[#allocation6 + $0x60] sm:$0xff]
    %v105 = vld [vmem:[#allocation6 + $0x68] sm:$0xff]
    %v106 = vld [vmem:[#allocation6 + $0x70] sm:$0xff]
    %v107 = vld [vmem:[#allocation6 + $0x78] sm:$0xff]
    %v108 = vld [vmem:[#allocation8] sm:$0x1]
    %v110 = vlaneseq
    %v111 = vshrl.u32 %v110, 7
    %v112 = vsub.s32 0, %v111
    %v113 = vrot.slane %v108, %v112
    %115 = vmatprep.subr.mxu0 0.0
    %116 = vmatpush1.msra.mxu0 %v92
    %117 = vmatprep.subr.mxu0 0.0
    %118 = vmatpush1.msra.mxu0 %v93
    %119 = vmatprep.subr.mxu0 0.0
    %120 = vmatpush1.msra.mxu0 %v94
    %121 = vmatprep.subr.mxu0 0.0
    %122 = vmatpush1.msra.mxu0 %v95
    %123 = vmatprep.subr.mxu0 0.0
    %124 = vmatpush1.msra.mxu0 %v96
    %125 = vmatprep.subr.mxu0 0.0
    %126 = vmatpush1.msra.mxu0 %v97
    %127 = vmatprep.subr.mxu0 0.0
    %128 = vmatpush1.msra.mxu0 %v98
    %129 = vmatprep.subr.mxu0 0.0
    %130 = vmatpush1.msra.mxu0 %v99
    %131 = vmatprep.subr.mxu0 0.0
    %132 = vmatpush1.msra.mxu0 %v100
    %133 = vmatprep.subr.mxu0 0.0
    %134 = vmatpush1.msra.mxu0 %v101
    %135 = vmatprep.subr.mxu0 0.0
    %136 = vmatpush1.msra.mxu0 %v102
    %137 = vmatprep.subr.mxu0 0.0
    %138 = vmatpush1.msra.mxu0 %v103
    %139 = vmatprep.subr.mxu0 0.0
    %140 = vmatpush1.msra.mxu0 %v104
    %141 = vmatprep.subr.mxu0 0.0
    %142 = vmatpush1.msra.mxu0 %v105
    %143 = vmatprep.subr.mxu0 0.0
    %144 = vmatpush1.msra.mxu0 %v106
    %145 = vmatprep.subr.mxu0 0.0
    %146 = vmatpush1.msra.mxu0 %v107
    %147 = vmatprep.subr.mxu0 0.0
    %148 = vmatpush1.msra.mxu0 0.0
    %149 = vmatprep.subr.mxu0 0.0
    %150 = vmatpush1.msra.mxu0 0.0
    %151 = vmatprep.subr.mxu0 0.0
    %152 = vmatpush1.msra.mxu0 0.0
    %153 = vmatprep.subr.mxu0 0.0
    %154 = vmatpush1.msra.mxu0 0.0
    %155 = vmatprep.subr.mxu0 0.0
    %156 = vmatpush1.msra.mxu0 0.0
    %157 = vmatprep.subr.mxu0 0.0
    %158 = vmatpush1.msra.mxu0 0.0
    %159 = vmatprep.subr.mxu0 0.0
    %160 = vmatpush1.msra.mxu0 0.0
    %161 = vmatprep.subr.mxu0 0.0
    %162 = vmatpush1.msra.mxu0 0.0
    %163 = vmatprep.subr.mxu0 0.0
    %164 = vmatpush1.msra.mxu0 0.0
    %165 = vmatprep.subr.mxu0 0.0
    %166 = vmatpush1.msra.mxu0 0.0
    %167 = vmatprep.subr.mxu0 0.0
    %168 = vmatpush1.msra.mxu0 0.0
    %169 = vmatprep.subr.mxu0 0.0
    %170 = vmatpush1.msra.mxu0 0.0
    %171 = vmatprep.subr.mxu0 0.0
    %172 = vmatpush1.msra.mxu0 0.0
    %173 = vmatprep.subr.mxu0 0.0
    %174 = vmatpush1.msra.mxu0 0.0
    %175 = vmatprep.subr.mxu0 0.0
    %176 = vmatpush1.msra.mxu0 0.0
    %177 = vmatprep.subr.mxu0 0.0
    %178 = vmatpush1.msra.mxu0 0.0
    %179 = vmatprep.mubr.f32.mxu0 0.0
    %180 = vmatmul.mubr.f32.gmra.mrb[0].mxu0 %v90
    %v181 = vpop.f32.mrb[0].mxu0
    %v182 = vadd.f32 %v113, %v181
    %v183 = vpop.f32.mrb[0].mxu0
    %184 = vmatprep.mubr.f32.mxu0 0.0
    %185 = vmatmul.mubr.f32.gmra.mrb[0].mxu0 %v91
    %v186 = vpop.f32.mrb[0].mxu0
    %v187 = vadd.f32 %v113, %v186
    %v188 = vpop.f32.mrb[0].mxu0
    %189 = vdwg.mxu0
    %190 = vst [vmem:[#allocation9] sm:$0xff] %v182
    %191 = vst [vmem:[#allocation9 + $0x8] sm:$0xff] %v187
    // Predicated region
    $region30: #{tpu_custom_call.1} parent=1 // pred_check
      _
    $region31: #{tpu_custom_call.1} parent=1 // pred_check_branch
      %193 = sbr.rel (0) target = $region33
    $region32: #{tpu_custom_call.1} parent=1 // pred_region
      %s195 = ssub.s32 256, 256
      %196 = vsyncadd [#allocation5], %s195
      %s197 = sshll.u32 [#allocation9], 4
      %s198 = int_to_ptr.vmem [resolvable:$true] %s197
      %203 = dma.vmem_to_hbm [thread:$0]  %s198, 256, %s3, [#allocation5], 128, 128, 8
    $region33: #{tpu_custom_call.1} parent=1 // pred_fallthru
      _
    // Predicated region
    $region34: #{tpu_custom_call.1} parent=1 // pred_check
      _
    $region35: #{tpu_custom_call.1} parent=1 // pred_check_branch
      %205 = sbr.rel (0) target = $region37
    $region36: #{tpu_custom_call.1} parent=1 // pred_region
      %206 = dma.done [#allocation5], 256
    $region37: #{tpu_custom_call.1} parent=1 // pred_fallthru
      _
    %207 = vsyncpa [#allocation4], 1
    %208 = vsyncpa [#allocation7], 1
    %209 = vsyncpa [#allocation5], 1

</llo_original>
